<compile_context>
chip_gen: v5e
topology: v5e:2x2
jax: 0.10.0
libtpu: 0.0.40
codegen_flags: <defaults>
</compile_context>

<pallas_src>
import functools
import math

import jax
import jax.numpy as jnp
from jax.experimental import pallas as pl
from jax.experimental.pallas import tpu as pltpu


def _round_up(x, m):
    return (x + m - 1) // m * m


# ----------------------------- Pallas kernel --------------------------------

def _conv_se_kernel(w_ref, b_ref, wcomb_ref, bcomb_ref, psum_ref, pt_ref, o_ref,
                    *, inv_s):
    """One (batch, spatial-tile) step of fused Conv3d + SE gating.

    w_ref     : (C_out, Kp)    bf16  conv weight (K = C_in*kD*kH*kW, zero-padded to Kp)
    b_ref     : (C_out, 1)     f32   conv bias (column -> broadcasts over lanes)
    wcomb_ref : (C_out, Kp)    f32   w_se @ w   (excite conv folded with conv, pooled path)
    bcomb_ref : (C_out, 1)     f32   w_se @ b + b_se
    psum_ref  : (1, 1, Kp)     f32   per-batch column sums of the patch matrix
    pt_ref    : (1, Kp, TM)    bf16  transposed im2col patches for this batch/tile
    o_ref     : (1, C_out, TM) f32   gated conv output (spatial on the 128-lane axis)
    """
    # Conv as matmul on the MXU: bf16 x bf16 -> f32 accumulate.  Output (C_out, TM)
    # keeps the lane axis spatial => dense, unmasked stores.
    conv = jnp.dot(w_ref[...], pt_ref[0],
                   preferred_element_type=jnp.float32) + b_ref[...]      # (C_out, TM)

    # SE gating, fused via linearity:
    #   mean_pool(conv)[c] = (sum_k w[c,k] * psum[k]) / S + b[c]
    #   logit = w_se @ mean_pool + b_se  ==  (wcomb @ psum) / S + bcomb
    logit = jnp.sum(wcomb_ref[...] * psum_ref[0], axis=1,
                    keepdims=True) * inv_s + bcomb_ref[...]              # (C_out, 1)
    attn = jax.nn.sigmoid(logit)                                         # (C_out, 1)

    o_ref[0] = (conv * attn).astype(o_ref.dtype)


# ----------------------------- wrapper ---------------------------------------

def conv3d_segating(x, w, b, w_se, b_se, *, stride=(1, 1, 1), padding=(1, 1, 1),
                    tile_m=512, compute_dtype=jnp.bfloat16):
    """Forward pass of Conv_3d (batchnorm=False): Conv3d + SEGating.

    x    : (N, C_in, D, H, W) f32
    w    : (C_out, C_in, kD, kH, kW),  b: (C_out,)
    w_se : (C_out, C_out) [1x1x1 SE conv weight, squeezed],  b_se: (C_out,)
    returns (N, C_out, Do, Ho, Wo) f32 in NCDHW (no output transpose needed).
    """
    N, C_in, D, H, W = x.shape
    C_out = w.shape[0]
    kd, kh, kw = w.shape[2:]
    sd, sh, sw = stride
    pd, ph, pw = padding
    Do = (D + 2 * pd - kd) // sd + 1
    Ho = (H + 2 * ph - kh) // sh + 1
    Wo = (W + 2 * pw - kw) // sw + 1
    S = Do * Ho * Wo
    K = C_in * kd * kh * kw

    # Tiling: K padded to a lane multiple (dense MXU K-dim, esp. v5e); spatial axis
    # tiled with large lane-dense tiles; ragged S handled by zero-padding, no asserts.
    Kp = _round_up(K, 128)
    TM = min(tile_m, _round_up(S, 128))
    Sp = _round_up(S, TM)
    Mt = Sp // TM

    # ---- im2col, transposed layout (N, K, S): C_in-major / kernel-minor to match
    #      w.reshape(C_out, K).  Built in bf16 (halves patch HBM traffic).
    # TODO(synk): replace this wrapper-side im2col with an in-kernel implicit GEMM
    # (halo blocks over the padded input) so the K-times-expanded patch tensor is
    # never materialized in HBM; at real UNet shapes that is the remaining big cost.
    xp = jnp.pad(x, ((0, 0), (0, 0), (pd, pd), (ph, ph), (pw, pw))).astype(compute_dtype)
    cols = []
    for i in range(kd):
        for j in range(kh):
            for l in range(kw):
                cols.append(xp[:, :, i:i + Do * sd:sd,
                                j:j + Ho * sh:sh,
                                l:l + Wo * sw:sw])                        # (N, C_in, Do, Ho, Wo)
    pt = jnp.stack(cols, axis=2).reshape(N, K, S)                         # (N, K, S)
    pt = jnp.pad(pt, ((0, 0), (0, Kp - K), (0, Sp - S)))                  # zero-pad K and S

    # Per-batch column sums of the patch matrix (f32 accumulation) for the fused pool.
    psum = jnp.stack([c.astype(jnp.float32).sum(axis=(2, 3, 4)) for c in cols],
                     axis=-1).reshape(N, K)                               # (N, K)
    psum = jnp.pad(psum, ((0, 0), (0, Kp - K))).reshape(N, 1, Kp)

    # Weights: conv weight (C_out, Kp) bf16; SE excite folded with conv (both linear)
    # for the pooled path, kept in f32.
    w_mat = jnp.pad(w.reshape(C_out, K), ((0, 0), (0, Kp - K)))
    w_bf = w_mat.astype(compute_dtype)
    b_col = b.reshape(C_out, 1).astype(jnp.float32)
    wcomb = w_se.astype(jnp.float32) @ w_bf.astype(jnp.float32)           # (C_out, Kp)
    bcomb = (w_se.astype(jnp.float32) @ b + b_se).reshape(C_out, 1)

    kernel = functools.partial(_conv_se_kernel, inv_s=1.0 / float(S))

    flops = 2 * N * Sp * Kp * C_out + 2 * N * Mt * Kp * C_out + 3 * N * C_out * Sp
    bytes_accessed = (pt.size * pt.dtype.itemsize + N * C_out * Sp * 4
                      + psum.size * 4 + (w_bf.size + wcomb.size) * 4)
    vmem_limit = int(min(64 << 20,
                         max(8 << 20, 6 * (Kp * TM * 2 + C_out * TM * 4))))

    out_flat = pl.pallas_call(
        kernel,
        out_shape=jax.ShapeDtypeStruct((N, C_out, Sp), jnp.float32),
        grid_spec=pltpu.PrefetchScalarGridSpec(
            num_scalar_prefetch=0,
            grid=(N, Mt),                          # all tiles independent
            in_specs=[
                pl.BlockSpec((C_out, Kp), lambda n, m: (0, 0)),
                pl.BlockSpec((C_out, 1), lambda n, m: (0, 0)),
                pl.BlockSpec((C_out, Kp), lambda n, m: (0, 0)),
                pl.BlockSpec((C_out, 1), lambda n, m: (0, 0)),
                pl.BlockSpec((1, 1, Kp), lambda n, m: (n, 0, 0)),
                pl.BlockSpec((1, Kp, TM), lambda n, m: (n, 0, m)),
            ],
            out_specs=pl.BlockSpec((1, C_out, TM), lambda n, m: (n, 0, m)),
        ),
        compiler_params=pltpu.CompilerParams(
            dimension_semantics=("parallel", "parallel"),
            vmem_limit_bytes=vmem_limit,
        ),
        cost_estimate=pl.CostEstimate(flops=int(flops),
                                      transcendentals=int(N * Mt * C_out),
                                      bytes_accessed=int(bytes_accessed)),
    )(w_bf, b_col, wcomb, bcomb, psum, pt)

    # Slice away spatial padding; layout is already channel-major => direct NCDHW.
    return out_flat[:, :, :S].reshape(N, C_out, Do, Ho, Wo)


# ----------------------------- reference (pure JAX) ---------------------------

def _reference(x, w, b, w_se, b_se, stride, padding, compute_dtype):
    conv = jax.lax.conv_general_dilated(
        x.astype(compute_dtype), w.astype(compute_dtype),
        window_strides=stride,
        padding=[(p, p) for p in padding],
        dimension_numbers=("NCDHW", "OIDHW", "NCDHW"),
        preferred_element_type=jnp.float32,
    ) + b[None, :, None, None, None]
    pool = conv.mean(axis=(2, 3, 4))                            # (N, C_out)
    attn = jax.nn.sigmoid(pool @ w_se.T + b_se)                 # (N, C_out)
    return conv * attn[:, :, None, None, None]


# ----------------------------- main -------------------------------------------

if __name__ == "__main__":
    N, C_in, C_out = 2, 4, 8
    D, H, W = 4, 8, 8
    k = 3
    stride = (1, 1, 1)
    padding = (1, 1, 1)

    key = jax.random.PRNGKey(0)
    k1, k2, k3, k4, k5 = jax.random.split(key, 5)

    x = jax.random.normal(k1, (N, C_in, D, H, W), jnp.float32)

    # Deterministic PyTorch-style (kaiming-uniform-ish) init
    fan_in = C_in * k * k * k
    bound = 1.0 / math.sqrt(fan_in)
    w = jax.random.uniform(k2, (C_out, C_in, k, k, k), jnp.float32, -bound, bound)
    b = jax.random.uniform(k3, (C_out,), jnp.float32, -bound, bound)

    bound_se = 1.0 / math.sqrt(C_out)
    w_se = jax.random.uniform(k4, (C_out, C_out), jnp.float32, -bound_se, bound_se)
    b_se = jax.random.uniform(k5, (C_out,), jnp.float32, -bound_se, bound_se)

    fwd = jax.jit(functools.partial(conv3d_segating, stride=stride, padding=padding))
    out = jax.block_until_ready(fwd(x, w, b, w_se, b_se))

    ref = _reference(x, w, b, w_se, b_se, stride, padding, jnp.bfloat16)
    assert out.shape == ref.shape == (N, C_out, D, H, W)
    # Both paths use bf16 MXU operands with f32 accumulation; the residual delta is
    # accumulation-order only, so 1e-3 is a comfortable bound.
    assert jnp.allclose(out, ref, atol=1e-3, rtol=1e-3), "mismatch vs reference"

    print("KERNEL_OK")
</pallas_src>

<mosaic_0001>
module attributes {stable_mosaic.version = 11 : i64} {
  func.func @_conv_se_kernel(%arg0: i32, %arg1: i32, %arg2: memref<8x128xbf16, #tpu.memory_space<vmem>>, %arg3: memref<8x1xf32, #tpu.memory_space<vmem>>, %arg4: memref<8x128xf32, #tpu.memory_space<vmem>>, %arg5: memref<8x1xf32, #tpu.memory_space<vmem>>, %arg6: memref<1x1x128xf32, #tpu.memory_space<vmem>>, %arg7: memref<1x128x256xbf16, #tpu.memory_space<vmem>>, %arg8: memref<1x8x256xf32, #tpu.memory_space<vmem>>) attributes {dimension_semantics = [#tpu.dimension_semantics<parallel>, #tpu.dimension_semantics<parallel>], iteration_bounds = array<i64: 2, 1>, scalar_prefetch = 0 : i64, scratch_operands = 0 : i64, tpu.core_type = #tpu.core_type<tc>, window_params = [{pipeline_mode = #tpu.pipeline_mode<synchronous>, transform_indices = @transform_0, window_bounds = array<i64: 8, 128>}, {pipeline_mode = #tpu.pipeline_mode<synchronous>, transform_indices = @transform_1, window_bounds = array<i64: 8, 1>}, {pipeline_mode = #tpu.pipeline_mode<synchronous>, transform_indices = @transform_2, window_bounds = array<i64: 8, 128>}, {pipeline_mode = #tpu.pipeline_mode<synchronous>, transform_indices = @transform_3, window_bounds = array<i64: 8, 1>}, {transform_indices = @transform_4, window_bounds = array<i64: 1, 1, 128>}, {transform_indices = @transform_5, window_bounds = array<i64: 1, 128, 256>}, {transform_indices = @transform_6, window_bounds = array<i64: 1, 8, 256>}]} {
    %c0 = arith.constant 0 : index
    %c0_0 = arith.constant 0 : index
    %0 = vector.load %arg2[%c0, %c0_0] : memref<8x128xbf16, #tpu.memory_space<vmem>>, vector<8x128xbf16>
    %c0_1 = arith.constant 0 : index
    %c0_2 = arith.constant 0 : index
    %c0_3 = arith.constant 0 : index
    %1 = vector.load %arg7[%c0_1, %c0_2, %c0_3] : memref<1x128x256xbf16, #tpu.memory_space<vmem>>, vector<1x128x256xbf16>
    %2 = vector.shape_cast %1 : vector<1x128x256xbf16> to vector<128x256xbf16>
    %cst = arith.constant dense<0.000000e+00> : vector<8x256xf32>
    %3 = tpu.matmul %0, %2, %cst {dimension_numbers = #tpu.dot_dimension_numbers<[1], [0], [0], [1], [0, 0, 1, 1], [], []>} : vector<8x128xbf16>, vector<128x256xbf16>, vector<8x256xf32> -> vector<8x256xf32>
    %c0_4 = arith.constant 0 : index
    %c0_5 = arith.constant 0 : index
    %4 = vector.load %arg3[%c0_4, %c0_5] : memref<8x1xf32, #tpu.memory_space<vmem>>, vector<8x1xf32>
    %5 = vector.broadcast %4 : vector<8x1xf32> to vector<8x256xf32>
    %6 = arith.addf %3, %5 : vector<8x256xf32>
    %c0_6 = arith.constant 0 : index
    %c0_7 = arith.constant 0 : index
    %7 = vector.load %arg4[%c0_6, %c0_7] : memref<8x128xf32, #tpu.memory_space<vmem>>, vector<8x128xf32>
    %c0_8 = arith.constant 0 : index
    %c0_9 = arith.constant 0 : index
    %c0_10 = arith.constant 0 : index
    %8 = vector.load %arg6[%c0_8, %c0_9, %c0_10] : memref<1x1x128xf32, #tpu.memory_space<vmem>>, vector<1x1x128xf32>
    %9 = vector.shape_cast %8 : vector<1x1x128xf32> to vector<1x128xf32>
    %10 = vector.broadcast %9 : vector<1x128xf32> to vector<8x128xf32>
    %11 = arith.mulf %7, %10 : vector<8x128xf32>
    %cst_11 = arith.constant dense<0.000000e+00> : vector<8xf32>
    %12 = vector.multi_reduction <add>, %11, %cst_11 [1] : vector<8x128xf32> to vector<8xf32>
    %13 = vector.shape_cast %12 : vector<8xf32> to vector<8x1xf32>
    %cst_12 = arith.constant 3.906250e-03 : f32
    %14 = vector.broadcast %cst_12 : f32 to vector<8x1xf32>
    %15 = arith.mulf %13, %14 : vector<8x1xf32>
    %c0_13 = arith.constant 0 : index
    %c0_14 = arith.constant 0 : index
    %16 = vector.load %arg5[%c0_13, %c0_14] : memref<8x1xf32, #tpu.memory_space<vmem>>, vector<8x1xf32>
    %17 = arith.addf %15, %16 : vector<8x1xf32>
    %18 = arith.negf %17 : vector<8x1xf32>
    %19 = math.exp %18 : vector<8x1xf32>
    %cst_15 = arith.constant 1.000000e+00 : f32
    %20 = vector.broadcast %cst_15 : f32 to vector<8x1xf32>
    %21 = arith.addf %20, %19 : vector<8x1xf32>
    %22 = arith.divf %20, %21 : vector<8x1xf32>
    %23 = vector.broadcast %22 : vector<8x1xf32> to vector<8x256xf32>
    %24 = arith.mulf %6, %23 : vector<8x256xf32>
    %c0_16 = arith.constant 0 : index
    %c0_17 = arith.constant 0 : index
    %c0_18 = arith.constant 0 : index
    %25 = vector.load %arg8[%c0_16, %c0_17, %c0_18] : memref<1x8x256xf32, #tpu.memory_space<vmem>>, vector<1x8x256xf32>
    %26 = vector.shape_cast %25 : vector<1x8x256xf32> to vector<8x256xf32>
    %27 = vector.shape_cast %24 : vector<8x256xf32> to vector<1x8x256xf32>
    tpu.vector_store %arg8[%c0_16, %c0_17, %c0_18], %27 {strides = array<i32>} : memref<1x8x256xf32, #tpu.memory_space<vmem>>, vector<1x8x256xf32>,
    return
  }
  func.func @transform_0(%arg0: i32, %arg1: i32) -> (i32, i32) {
    %c0_i32 = arith.constant 0 : i32
    %c0_i32_0 = arith.constant 0 : i32
    %c0_i32_1 = arith.constant 0 : i32
    return %c0_i32, %c0_i32_0 : i32, i32
  }
  func.func @transform_1(%arg0: i32, %arg1: i32) -> (i32, i32) {
    %c0_i32 = arith.constant 0 : i32
    %c0_i32_0 = arith.constant 0 : i32
    %c0_i32_1 = arith.constant 0 : i32
    return %c0_i32, %c0_i32_0 : i32, i32
  }
  func.func @transform_2(%arg0: i32, %arg1: i32) -> (i32, i32) {
    %c0_i32 = arith.constant 0 : i32
    %c0_i32_0 = arith.constant 0 : i32
    %c0_i32_1 = arith.constant 0 : i32
    return %c0_i32, %c0_i32_0 : i32, i32
  }
  func.func @transform_3(%arg0: i32, %arg1: i32) -> (i32, i32) {
    %c0_i32 = arith.constant 0 : i32
    %c0_i32_0 = arith.constant 0 : i32
    %c0_i32_1 = arith.constant 0 : i32
    return %c0_i32, %c0_i32_0 : i32, i32
  }
  func.func @transform_4(%arg0: i32, %arg1: i32) -> (i32, i32, i32) {
    %c0_i32 = arith.constant 0 : i32
    %c0_i32_0 = arith.constant 0 : i32
    %c0_i32_1 = arith.constant 0 : i32
    return %arg0, %c0_i32, %c0_i32_0 : i32, i32, i32
  }
  func.func @transform_5(%arg0: i32, %arg1: i32) -> (i32, i32, i32) {
    %c0_i32 = arith.constant 0 : i32
    %c0_i32_0 = arith.constant 0 : i32
    return %arg0, %c0_i32, %arg1 : i32, i32, i32
  }
  func.func @transform_6(%arg0: i32, %arg1: i32) -> (i32, i32, i32) {
    %c0_i32 = arith.constant 0 : i32
    %c0_i32_0 = arith.constant 0 : i32
    return %arg0, %c0_i32, %arg1 : i32, i32, i32
  }
}

</mosaic_0001>

<llo_original>
// kernel: conv3d_segating.1
$region0: #{conv3d_segating.1}
  #allocation0 [shape = 'u32[]', space=smem, size = 0x4, offset = 0x4, fixed_abs, tag = 'smem constant byte address 0x4 - core index']
  #allocation1 [shape = 'u32[72,128]{1,0:T(1,128)}', space=vmem, size = 0x9000, scoped, tag = 'internal scratch']
  %s0 = inlined_call_operand.vmem [shape: bf16[8,128], index: 0, kind: input, shape index: {}]
  %s1 = inlined_call_operand.vmem [shape: f32[8,1], index: 1, kind: input, shape index: {}]
  %s2 = inlined_call_operand.vmem [shape: f32[8,128], index: 2, kind: input, shape index: {}]
  %s3 = inlined_call_operand.vmem [shape: f32[8,1], index: 3, kind: input, shape index: {}]
  %s4 = inlined_call_operand.vmem [shape: f32[2,1,128], index: 4, kind: input, shape index: {}]
  %s5 = inlined_call_operand.vmem [shape: bf16[2,128,256], index: 5, kind: input, shape index: {}]
  %s6 = inlined_call_operand.vmem [shape: f32[2,8,256], index: 6, kind: output, shape index: {}]
  %s7 = sld [smem:[#allocation0]]
  $region57: #{conv3d_segating.1} parent=0
    _
  %s9 = ssub.s32 1, %s7
  %s10 = scalar_select 0, %s9, %s7
  loop: start=0, step=1, limit=4
  $region2: #{conv3d_segating.1} parent=0 // loop_pre_header
    _
  $region3: #{conv3d_segating.1} parent=0 // loop_header
    %s12 = sphi 0, %s16
    %p13 = scmp.ge.s32.totalorder %s12, 4
    %s19 = sphi 0, %s31
    %s20 = sphi 0, %s27
    %s21 = sphi 0, %s19
    %s22 = sphi 0, %s20
    %s23 = sphi 0, %s21
    %s24 = sphi 0, %s22
    %s32 = sphi 0, %s32
    %s34 = sphi 0, %s32
    %s35 = sphi 0, %s34
    %s49 = sphi 0, %s35
    %s53 = sphi 0, %s53
    %s55 = sphi 0, %s53
    %s56 = sphi 0, %s55
    %s70 = sphi 0, %s56
    %s74 = sphi 0, %s74
    %s76 = sphi 0, %s74
    %s77 = sphi 0, %s76
    %s91 = sphi 0, %s77
    %s95 = sphi 0, %s95
    %s97 = sphi 0, %s95
    %s98 = sphi 0, %s97
    %s112 = sphi 0, %s98
    %s118 = sphi 0, %s120
    %s121 = sphi 0, %s118
    %s122 = sphi 0, %s121
    %s138 = sphi 0, %s122
    %s146 = sphi 0, %s148
    %s149 = sphi 0, %s146
    %s150 = sphi 0, %s149
    %s166 = sphi 0, %s150
    %s174 = sphi 0, %s176
    %s177 = sphi 0, %s174
    %s178 = sphi 0, %s177
    %s194 = sphi 0, %s178
  $region4: #{conv3d_segating.1} parent=0 // loop_header_branch
    %15 = sbr.rel (%p13) target = $region8
  $region5: #{conv3d_segating.1} parent=0 // loop_body
    %s17 = ssub.s32 %s12, 1
    %s18 = ssub.s32 %s12, 2
    %s25 = sadd.s32 1, %s20
    %p26 = scmp.ge.s32.totalorder %s25, 1
    %s27 = scalar_select %p26, 0, %s25
    %s28 = sadd.s32 1, %s19
    %s29 = scalar_select %p26, %s28, %s19
    %p30 = scmp.ge.s32.totalorder %s29, 2
    %s31 = scalar_select %p30, 0, %s29
    %s33 = sadd.s32 %s32, 1
    %p36 = scmp.eq.s32.totalorder %s12, 1
    %p37 = scmp.ne.s32.totalorder %s32, %s34
    %p38 = scmp.eq.s32.totalorder %s12, 0
    %p39 = por %p37, %p38
    %p40 = scmp.ne.s32.totalorder %s32, %s34
    %p41 = scmp.eq.s32.totalorder %s17, 1
    %p42 = por %p40, %p41
    %p43 = scmp.ne.s32.totalorder %s34, %s35
    %p44 = scmp.eq.s32.totalorder %s17, 0
    %p45 = por %p43, %p44
    %p46 = scmp.ne.s32.totalorder %s34, %s35
    %p47 = scmp.eq.s32.totalorder %s18, 1
    %p48 = por %p46, %p47
    %p50 = scmp.ne.s32.totalorder %s35, %s49
    %p51 = scmp.eq.s32.totalorder %s18, 0
    %p52 = por %p50, %p51
    %s54 = sadd.s32 %s53, 1
    %p57 = scmp.eq.s32.totalorder %s12, 1
    %p58 = scmp.ne.s32.totalorder %s53, %s55
    %p59 = scmp.eq.s32.totalorder %s12, 0
    %p60 = por %p58, %p59
    %p61 = scmp.ne.s32.totalorder %s53, %s55
    %p62 = scmp.eq.s32.totalorder %s17, 1
    %p63 = por %p61, %p62
    %p64 = scmp.ne.s32.totalorder %s55, %s56
    %p65 = scmp.eq.s32.totalorder %s17, 0
    %p66 = por %p64, %p65
    %p67 = scmp.ne.s32.totalorder %s55, %s56
    %p68 = scmp.eq.s32.totalorder %s18, 1
    %p69 = por %p67, %p68
    %p71 = scmp.ne.s32.totalorder %s56, %s70
    %p72 = scmp.eq.s32.totalorder %s18, 0
    %p73 = por %p71, %p72
    %s75 = sadd.s32 %s74, 1
    %p78 = scmp.eq.s32.totalorder %s12, 1
    %p79 = scmp.ne.s32.totalorder %s74, %s76
    %p80 = scmp.eq.s32.totalorder %s12, 0
    %p81 = por %p79, %p80
    %p82 = scmp.ne.s32.totalorder %s74, %s76
    %p83 = scmp.eq.s32.totalorder %s17, 1
    %p84 = por %p82, %p83
    %p85 = scmp.ne.s32.totalorder %s76, %s77
    %p86 = scmp.eq.s32.totalorder %s17, 0
    %p87 = por %p85, %p86
    %p88 = scmp.ne.s32.totalorder %s76, %s77
    %p89 = scmp.eq.s32.totalorder %s18, 1
    %p90 = por %p88, %p89
    %p92 = scmp.ne.s32.totalorder %s77, %s91
    %p93 = scmp.eq.s32.totalorder %s18, 0
    %p94 = por %p92, %p93
    %s96 = sadd.s32 %s95, 1
    %p99 = scmp.eq.s32.totalorder %s12, 1
    %p100 = scmp.ne.s32.totalorder %s95, %s97
    %p101 = scmp.eq.s32.totalorder %s12, 0
    %p102 = por %p100, %p101
    %p103 = scmp.ne.s32.totalorder %s95, %s97
    %p104 = scmp.eq.s32.totalorder %s17, 1
    %p105 = por %p103, %p104
    %p106 = scmp.ne.s32.totalorder %s97, %s98
    %p107 = scmp.eq.s32.totalorder %s17, 0
    %p108 = por %p106, %p107
    %p109 = scmp.ne.s32.totalorder %s97, %s98
    %p110 = scmp.eq.s32.totalorder %s18, 1
    %p111 = por %p109, %p110
    %p113 = scmp.ne.s32.totalorder %s98, %s112
    %p114 = scmp.eq.s32.totalorder %s18, 0
    %p115 = por %p113, %p114
    %s116 = ssub.s32 %s19, %s31
    %p117 = scmp.eq.s32.totalorder %s116, 0
    %s119 = sadd.s32 %s118, 1
    %s120 = scalar_select %p117, %s118, %s119
    %p123 = pneg %p117
    %p124 = scmp.eq.s32.totalorder %s12, 1
    %p125 = por %p123, %p124
    %p126 = scmp.ne.s32.totalorder %s118, %s121
    %p127 = scmp.eq.s32.totalorder %s12, 0
    %p128 = por %p126, %p127
    %p129 = scmp.ne.s32.totalorder %s118, %s121
    %p130 = scmp.eq.s32.totalorder %s17, 1
    %p131 = por %p129, %p130
    %p132 = scmp.ne.s32.totalorder %s121, %s122
    %p133 = scmp.eq.s32.totalorder %s17, 0
    %p134 = por %p132, %p133
    %p135 = scmp.ne.s32.totalorder %s121, %s122
    %p136 = scmp.eq.s32.totalorder %s18, 1
    %p137 = por %p135, %p136
    %p139 = scmp.ne.s32.totalorder %s122, %s138
    %p140 = scmp.eq.s32.totalorder %s18, 0
    %p141 = por %p139, %p140
    %s142 = ssub.s32 %s19, %s31
    %s143 = ssub.s32 %s20, %s27
    %s144 = sor.u32 %s142, %s143
    %p145 = scmp.eq.s32.totalorder %s144, 0
    %s147 = sadd.s32 %s146, 1
    %s148 = scalar_select %p145, %s146, %s147
    %p151 = pneg %p145
    %p152 = scmp.eq.s32.totalorder %s12, 1
    %p153 = por %p151, %p152
    %p154 = scmp.ne.s32.totalorder %s146, %s149
    %p155 = scmp.eq.s32.totalorder %s12, 0
    %p156 = por %p154, %p155
    %p157 = scmp.ne.s32.totalorder %s146, %s149
    %p158 = scmp.eq.s32.totalorder %s17, 1
    %p159 = por %p157, %p158
    %p160 = scmp.ne.s32.totalorder %s149, %s150
    %p161 = scmp.eq.s32.totalorder %s17, 0
    %p162 = por %p160, %p161
    %p163 = scmp.ne.s32.totalorder %s149, %s150
    %p164 = scmp.eq.s32.totalorder %s18, 1
    %p165 = por %p163, %p164
    %p167 = scmp.ne.s32.totalorder %s150, %s166
    %p168 = scmp.eq.s32.totalorder %s18, 0
    %p169 = por %p167, %p168
    %s170 = ssub.s32 %s19, %s31
    %s171 = ssub.s32 %s20, %s27
    %s172 = sor.u32 %s170, %s171
    %p173 = scmp.eq.s32.totalorder %s172, 0
    %s175 = sadd.s32 %s174, 1
    %s176 = scalar_select %p173, %s174, %s175
    %p179 = pneg %p173
    %p180 = scmp.eq.s32.totalorder %s12, 1
    %p181 = por %p179, %p180
    %p182 = scmp.ne.s32.totalorder %s174, %s177
    %p183 = scmp.eq.s32.totalorder %s12, 0
    %p184 = por %p182, %p183
    %p185 = scmp.ne.s32.totalorder %s174, %s177
    %p186 = scmp.eq.s32.totalorder %s17, 1
    %p187 = por %p185, %p186
    %p188 = scmp.ne.s32.totalorder %s177, %s178
    %p189 = scmp.eq.s32.totalorder %s17, 0
    %p190 = por %p188, %p189
    %p191 = scmp.ne.s32.totalorder %s177, %s178
    %p192 = scmp.eq.s32.totalorder %s18, 1
    %p193 = por %p191, %p192
    %p195 = scmp.ne.s32.totalorder %s178, %s194
    %p196 = scmp.eq.s32.totalorder %s18, 0
    %p197 = por %p195, %p196
    %p198 = scmp.le.s32.totalorder 1, %s12
    %p199 = scmp.lt.s32.totalorder %s12, 3
    %p200 = pnand %p198, %p199
    %p201 = pneg %p200
    // Predicated region
    $region9: #{conv3d_segating.1} parent=5 // pred_check
      _
    $region10: #{conv3d_segating.1} parent=5 // pred_check_branch
      %203 = sbr.rel (%p200) target = $region12
    $region11: #{conv3d_segating.1} parent=5 // pred_region
      %s204 = ssub.s32 %s12, 1
      // Predicated region
      $region13: #{conv3d_segating.1} parent=11 // pred_check
        %p205 = pneg %p45
      $region14: #{conv3d_segating.1} parent=11 // pred_check_branch
        %207 = sbr.rel (%p205) target = $region16
      $region15: #{conv3d_segating.1} parent=11 // pred_region
        _
      $region16: #{conv3d_segating.1} parent=11 // pred_fallthru
        _
      // Predicated region
      $region17: #{conv3d_segating.1} parent=11 // pred_check
        %p208 = pneg %p66
      $region18: #{conv3d_segating.1} parent=11 // pred_check_branch
        %210 = sbr.rel (%p208) target = $region20
      $region19: #{conv3d_segating.1} parent=11 // pred_region
        _
      $region20: #{conv3d_segating.1} parent=11 // pred_fallthru
        _
      // Predicated region
      $region21: #{conv3d_segating.1} parent=11 // pred_check
        %p211 = pneg %p87
      $region22: #{conv3d_segating.1} parent=11 // pred_check_branch
        %213 = sbr.rel (%p211) target = $region24
      $region23: #{conv3d_segating.1} parent=11 // pred_region
        _
      $region24: #{conv3d_segating.1} parent=11 // pred_fallthru
        _
      // Predicated region
      $region25: #{conv3d_segating.1} parent=11 // pred_check
        %p214 = pneg %p108
      $region26: #{conv3d_segating.1} parent=11 // pred_check_branch
        %216 = sbr.rel (%p214) target = $region28
      $region27: #{conv3d_segating.1} parent=11 // pred_region
        _
      $region28: #{conv3d_segating.1} parent=11 // pred_fallthru
        _
    $region12: #{conv3d_segating.1} parent=5 // pred_fallthru
      _
    %p217 = scmp.lt.s32.totalorder %s12, 2
    // Predicated region
    $region29: #{conv3d_segating.1} parent=5 // pred_check
      %p218 = pneg %p217
    $region30: #{conv3d_segating.1} parent=5 // pred_check_branch
      %220 = sbr.rel (%p218) target = $region32
    $region31: #{conv3d_segating.1} parent=5 // pred_region
      // Predicated region
      $region33: #{conv3d_segating.1} parent=31 // pred_check
        %p221 = pneg %p128
      $region34: #{conv3d_segating.1} parent=31 // pred_check_branch
        %223 = sbr.rel (%p221) target = $region36
      $region35: #{conv3d_segating.1} parent=31 // pred_region
        %p224 = scmp.lt.s32.totalorder %s19, 1
        %s225 = scalar_select %p224, %s19, 1
        %s226 = scalar_lea.vmem %s4, %s225
      $region36: #{conv3d_segating.1} parent=31 // pred_fallthru
        _
      // Predicated region
      $region37: #{conv3d_segating.1} parent=31 // pred_check
        %p227 = pneg %p156
      $region38: #{conv3d_segating.1} parent=31 // pred_check_branch
        %229 = sbr.rel (%p227) target = $region40
      $region39: #{conv3d_segating.1} parent=31 // pred_region
        %s230 = smul.u32 2, %s20
        %p231 = scmp.lt.s32.totalorder %s19, 1
        %s232 = scalar_select %p231, %s19, 1
        %p233 = scmp.lt.s32.totalorder %s230, 1
        %s234 = scalar_select %p233, %s230, 1
        %s235 = smul.addr %s232, 32
        %s236 = sadd.s32 %s234, %s235
        %s237 = smul.addr %s236, 4
        %s238 = scalar_lea.vmem %s5, %s237
        %s239 = smul.u32 2, %s20
      $region40: #{conv3d_segating.1} parent=31 // pred_fallthru
        _
    $region32: #{conv3d_segating.1} parent=5 // pred_fallthru
      _
    %p240 = scmp.le.s32.totalorder 1, %s12
    %p241 = scmp.lt.s32.totalorder %s12, 3
    %p242 = pnand %p240, %p241
    %p243 = pneg %p242
    // Predicated region
    $region41: #{conv3d_segating.1} parent=5 // pred_check
      _
    $region42: #{conv3d_segating.1} parent=5 // pred_check_branch
      %245 = sbr.rel (%p242) target = $region44
    $region43: #{conv3d_segating.1} parent=5 // pred_region
      %s246 = ssub.s32 %s12, 1
      %p247 = pneg %p45
      %p248 = pneg %p42
      %p249 = pneg %p66
      %p250 = pneg %p63
      %p251 = pneg %p87
      %p252 = pneg %p84
      %p253 = pneg %p108
      %p254 = pneg %p105
      %p255 = scmp.lt.s32.totalorder %s21, 1
      %s256 = scalar_select %p255, %s21, 1
      %s257 = scalar_lea.vmem %s4, %s256
      %p258 = pneg %p134
      %p259 = pneg %p131
      %s260 = smul.u32 2, %s22
      %p261 = scmp.lt.s32.totalorder %s21, 1
      %s262 = scalar_select %p261, %s21, 1
      %p263 = scmp.lt.s32.totalorder %s260, 1
      %s264 = scalar_select %p263, %s260, 1
      %s265 = smul.addr %s262, 32
      %s266 = sadd.s32 %s264, %s265
      %s267 = smul.addr %s266, 4
      %s268 = scalar_lea.vmem %s5, %s267
      %p269 = pneg %p162
      %p270 = pneg %p159
      %p271 = pneg %p190
      %p272 = pneg %p187
      %s273 = smul.u32 2, %s22
      %p274 = scmp.lt.s32.totalorder %s21, 1
      %s275 = scalar_select %p274, %s21, 1
      %p276 = scmp.lt.s32.totalorder %s273, 1
      %s277 = scalar_select %p276, %s273, 1
      %s278 = smul.addr %s275, 2
      %s279 = sadd.s32 %s277, %s278
      %s280 = smul.addr %s279, 8
      %s281 = scalar_lea.vmem %s6, %s280
      %p282 = scmp.lt.s32.totalorder %s21, 1
      %s283 = scalar_select %p282, %s21, 1
      %s284 = scalar_lea.vmem %s4, %s283
      %s285 = smul.u32 2, %s22
      %p286 = scmp.lt.s32.totalorder %s21, 1
      %s287 = scalar_select %p286, %s21, 1
      %p288 = scmp.lt.s32.totalorder %s285, 1
      %s289 = scalar_select %p288, %s285, 1
      %s290 = smul.addr %s287, 32
      %s291 = sadd.s32 %s289, %s290
      %s292 = smul.addr %s291, 4
      %s293 = scalar_lea.vmem %s5, %s292
      %s294 = smul.u32 2, %s22
      %s295 = smul.u32 2, %s22
      %p296 = scmp.lt.s32.totalorder %s21, 1
      %s297 = scalar_select %p296, %s21, 1
      %p298 = scmp.lt.s32.totalorder %s295, 1
      %s299 = scalar_select %p298, %s295, 1
      %s300 = smul.addr %s297, 2
      %s301 = sadd.s32 %s299, %s300
      %s302 = smul.addr %s301, 8
      %s303 = scalar_lea.vmem %s6, %s302
      %s304 = smul.u32 2, %s22
      %v305 = vld [vmem:[%s0] sm:$0xf]
      %v306 = vld [vmem:[%s293] sm:$0xff]
      %v307 = vld [vmem:[%s293 + $0x8] sm:$0xff]
      %v308 = vld [vmem:[%s293 + $0x10] sm:$0xff]
      %v309 = vld [vmem:[%s293 + $0x18] sm:$0xff]
      %v310 = vld [vmem:[%s293 + $0x20] sm:$0xff]
      %v311 = vld [vmem:[%s293 + $0x28] sm:$0xff]
      %v312 = vld [vmem:[%s293 + $0x30] sm:$0xff]
      %v313 = vld [vmem:[%s293 + $0x38] sm:$0xff]
      %v314 = vld [vmem:[%s293 + $0x40] sm:$0xff]
      %v315 = vld [vmem:[%s293 + $0x48] sm:$0xff]
      %v316 = vld [vmem:[%s293 + $0x50] sm:$0xff]
      %v317 = vld [vmem:[%s293 + $0x58] sm:$0xff]
      %v318 = vld [vmem:[%s293 + $0x60] sm:$0xff]
      %v319 = vld [vmem:[%s293 + $0x68] sm:$0xff]
      %v320 = vld [vmem:[%s293 + $0x70] sm:$0xff]
      %v321 = vld [vmem:[%s293 + $0x78] sm:$0xff]
      %v322 = vld [vmem:[%s1] sm:$0xff]
      %324 = vset.pattern.permute.xlu0 0
      %325 = vperm.xlu0 %324, %v322
      %v326 = vpop.permute.xlu0 %325
      %v344 = vunpack.c.l.b16 %v306
      %v345 = vunpack.c.h.b16 %v306
      %v346 = vunpack.c.l.b16 %v307
      %v347 = vunpack.c.h.b16 %v307
      %v348 = vunpack.c.l.b16 %v308
      %v349 = vunpack.c.h.b16 %v308
      %v350 = vunpack.c.l.b16 %v309
      %v351 = vunpack.c.h.b16 %v309
      %v352 = vunpack.c.l.b16 %v310
      %v353 = vunpack.c.h.b16 %v310
      %v354 = vunpack.c.l.b16 %v311
      %v355 = vunpack.c.h.b16 %v311
      %v356 = vunpack.c.l.b16 %v312
      %v357 = vunpack.c.h.b16 %v312
      %v358 = vunpack.c.l.b16 %v313
      %v359 = vunpack.c.h.b16 %v313
      %v360 = vunpack.c.l.b16 %v314
      %v361 = vunpack.c.h.b16 %v314
      %v362 = vunpack.c.l.b16 %v315
      %v363 = vunpack.c.h.b16 %v315
      %v364 = vunpack.c.l.b16 %v316
      %v365 = vunpack.c.h.b16 %v316
      %v366 = vunpack.c.l.b16 %v317
      %v367 = vunpack.c.h.b16 %v317
      %v368 = vunpack.c.l.b16 %v318
      %v369 = vunpack.c.h.b16 %v318
      %v370 = vunpack.c.l.b16 %v319
      %v371 = vunpack.c.h.b16 %v319
      %v372 = vunpack.c.l.b16 %v320
      %v373 = vunpack.c.h.b16 %v320
      %v374 = vunpack.c.l.b16 %v321
      %v375 = vunpack.c.h.b16 %v321
      %v376 = vpack.c.b16 %v346, %v344
      %v377 = vpack.c.b16 %v347, %v345
      %v378 = vpack.c.b16 %v350, %v348
      %v379 = vpack.c.b16 %v351, %v349
      %v380 = vpack.c.b16 %v354, %v352
      %v381 = vpack.c.b16 %v355, %v353
      %v382 = vpack.c.b16 %v358, %v356
      %v383 = vpack.c.b16 %v359, %v357
      %v384 = vpack.c.b16 %v362, %v360
      %v385 = vpack.c.b16 %v363, %v361
      %v386 = vpack.c.b16 %v366, %v364
      %v387 = vpack.c.b16 %v367, %v365
      %v388 = vpack.c.b16 %v370, %v368
      %v389 = vpack.c.b16 %v371, %v369
      %v390 = vpack.c.b16 %v374, %v372
      %v391 = vpack.c.b16 %v375, %v373
      %408 = vmatpush.bf16.msra.mxu0 %v390
      %409 = vmatpush.bf16.msra.mxu0 %v388
      %410 = vmatpush.bf16.msra.mxu0 %v386
      %411 = vmatpush.bf16.msra.mxu0 %v384
      %412 = vmatpush.bf16.msra.mxu0 %v382
      %413 = vmatpush.bf16.msra.mxu0 %v380
      %414 = vmatpush.bf16.msra.mxu0 %v378
      %415 = vmatpush.bf16.msra.mxu0 %v376
      %416 = vmatmul.bf16.gmra.mxu0 %v305
      %v417 = vpop.f32.mrf.mxu0
      %v418 = vadd.f32 %v326, %v417
      %v419 = vpop.f32.mrf.mxu0
      %420 = vdwg.mxu0
      %421 = vmatpush.bf16.msra.mxu0 %v391
      %422 = vmatpush.bf16.msra.mxu0 %v389
      %423 = vmatpush.bf16.msra.mxu0 %v387
      %424 = vmatpush.bf16.msra.mxu0 %v385
      %425 = vmatpush.bf16.msra.mxu0 %v383
      %426 = vmatpush.bf16.msra.mxu0 %v381
      %427 = vmatpush.bf16.msra.mxu0 %v379
      %428 = vmatpush.bf16.msra.mxu0 %v377
      %429 = vmatmul.bf16.gmra.mxu0 %v305
      %v430 = vpop.f32.mrf.mxu0
      %v431 = vadd.f32 %v326, %v430
      %v432 = vpop.f32.mrf.mxu0
      %433 = vdwg.mxu0
      %v434 = vld [vmem:[%s2] sm:$0xff]
      %v435 = vld [vmem:[%s284] sm:$0x1]
      %v437 = vperm.slane %v435, 0
      %v439 = vmul.f32 %v434, %v437
      %440 = vadd.xlane.f32.xlu0 %v439
      %v441 = vpop.xlane.xlu0 %440
      %v442 = vmul.f32 %v441, 0.00390625
      %v443 = vld [vmem:[%s3] sm:$0xff]
      %v444 = vadd.f32 %v442, %v443
      %v445 = vxor.u32 %v444, 2147483648
      %v446 = vmul.f32 %v445, 1.442695
      %v447 = vpow.pop %v446
      %v448 = vadd.f32 %v447, 1.0
      %v449 = vrcp.pop %v448
      %v450 = vmul.f32 %v448, %v449
      %v451 = vsub.f32 1.0, %v450
      %v452 = vmul.f32 %v449, %v451
      %v453 = vadd.f32 %v449, %v452
      %vm454 = vweird.f32 %v448
      %vm455 = vweird.f32 %v449
      %vm456 = vmor %vm454, %vm455
      %v457 = vsel %vm456, %v449, %v453
      %v458 = vand.u32 2147483647, %v448
      %vm459 = vcmp.eq.f32.partialorder %v458, 8.507059e+37
      %v460 = vand.u32 %v448, 2147483648
      %v461 = vor.u32 1.1754944e-38, %v460
      %v462 = vsel %vm459, %v461, %v457
      %v463 = vmul.f32 1.0, %v462
      %465 = vset.pattern.permute.xlu0 0
      %466 = vperm.xlu0 %465, %v463
      %v467 = vpop.permute.xlu0 %466
      %v469 = vmul.f32 %v418, %v467
      %v470 = vmul.f32 %v431, %v467
      %471 = vst [vmem:[%s303] sm:$0xff] %v469
      %472 = vst [vmem:[%s303 + $0x8] sm:$0xff] %v470
      %s473 = smul.u32 2, %s22
      %p474 = scmp.lt.s32.totalorder %s21, 1
      %s475 = scalar_select %p474, %s21, 1
      %p476 = scmp.lt.s32.totalorder %s473, 1
      %s477 = scalar_select %p476, %s473, 1
      %s478 = smul.addr %s475, 2
      %s479 = sadd.s32 %s477, %s478
      %s480 = smul.addr %s479, 8
      %s481 = scalar_lea.vmem %s6, %s480
      // Predicated region
      $region45: #{conv3d_segating.1} parent=43 // pred_check
        %p482 = pneg %p187
      $region46: #{conv3d_segating.1} parent=43 // pred_check_branch
        %484 = sbr.rel (%p482) target = $region48
      $region47: #{conv3d_segating.1} parent=43 // pred_region
        %s485 = smul.u32 2, %s22
      $region48: #{conv3d_segating.1} parent=43 // pred_fallthru
        _
    $region44: #{conv3d_segating.1} parent=5 // pred_fallthru
      _
    %p486 = scmp.le.s32.totalorder 2, %s12
    // Predicated region
    $region49: #{conv3d_segating.1} parent=5 // pred_check
      %p487 = pneg %p486
    $region50: #{conv3d_segating.1} parent=5 // pred_check_branch
      %489 = sbr.rel (%p487) target = $region52
    $region51: #{conv3d_segating.1} parent=5 // pred_region
      %s490 = ssub.s32 %s12, 2
      // Predicated region
      $region53: #{conv3d_segating.1} parent=51 // pred_check
        %p491 = pneg %p193
      $region54: #{conv3d_segating.1} parent=51 // pred_check_branch
        %493 = sbr.rel (%p491) target = $region56
      $region55: #{conv3d_segating.1} parent=51 // pred_region
        %s494 = smul.u32 2, %s24
        %p495 = scmp.lt.s32.totalorder %s23, 1
        %s496 = scalar_select %p495, %s23, 1
        %p497 = scmp.lt.s32.totalorder %s494, 1
        %s498 = scalar_select %p497, %s494, 1
        %s499 = smul.addr %s496, 2
        %s500 = sadd.s32 %s498, %s499
        %s501 = smul.addr %s500, 8
        %s502 = scalar_lea.vmem %s6, %s501
      $region56: #{conv3d_segating.1} parent=51 // pred_fallthru
        _
    $region52: #{conv3d_segating.1} parent=5 // pred_fallthru
      _
  $region6: #{conv3d_segating.1} parent=0 // loop_footer
    %s16 = sadd.s32 1, %s12
  $region7: #{conv3d_segating.1} parent=0 // loop_footer_branch
    %11 = sbr.rel target = $region3
  $region8: #{conv3d_segating.1} parent=0 // loop_exit
    _

</llo_original>
